<compile_context>
chip_gen: v6e
topology: v6e:2x2x1
jax: 0.10.0
libtpu: 0.0.40
codegen_flags: <defaults>
</compile_context>

<pallas_src>
import functools

import jax
import jax.numpy as jnp
from jax.experimental import pallas as pl
from jax.experimental.pallas import tpu as pltpu


def _round_up(x, m):
    return ((x + m - 1) // m) * m


def _mlp_kernel(x_ref, w1_ref, b1_ref, w2_ref, b2_ref, w3_ref, b3_ref, out_ref,
                *, precision):
    # Entire hot path (3 matmuls + biases + ReLUs) fused in VMEM.
    # x is cast to the weight dtype *here* so the HBM x stream keeps the
    # caller's dtype (no extra XLA cast pass over x).
    x = x_ref[...].astype(w1_ref.dtype)
    h1 = jnp.dot(x, w1_ref[...], preferred_element_type=jnp.float32,
                 precision=precision) + b1_ref[...]
    h1 = jnp.maximum(h1, 0.0)
    h2 = jnp.dot(h1.astype(w2_ref.dtype), w2_ref[...],
                 preferred_element_type=jnp.float32,
                 precision=precision) + b2_ref[...]
    h2 = jnp.maximum(h2, 0.0)
    h3 = jnp.dot(h2.astype(w3_ref.dtype), w3_ref[...],
                 preferred_element_type=jnp.float32,
                 precision=precision) + b3_ref[...]
    out_ref[...] = h3.astype(out_ref.dtype)
    # TODO(synk): on v5e, if a bundle dump shows vld/vst slot_util > 50%, chunk
    # the row tile with lax.fori_loop(unroll=True) over 256-512 row sub-tiles
    # so h1/h2 stay near vreg-resident instead of round-tripping VMEM.


@functools.lru_cache(maxsize=1)
def _tpu_generation_defaults():
    """(default block_n, vmem_limit_bytes) per TPU generation.

    v5e: 128 MiB VMEM but ~0.82 TB/s HBM + weak f32 path -> modest tiles.
    v6e: 128 MiB VMEM, ~1.4 TB/s HBM -> big tiles to amortize ~0.35us/step.
    v7x: only 64 MiB physical VMEM but ~3.2 TB/s HBM -> large-ish tiles, and
         cap the scoped limit at 48 MiB to leave Mosaic internal headroom.
    """
    kind = ""
    try:
        kind = jax.devices()[0].device_kind.lower()
    except Exception:
        pass
    if "v5" in kind:
        block_n, vmem_limit = 4096, 64 << 20
    elif "v7" in kind:
        block_n, vmem_limit = 6144, 48 << 20
    else:  # v6e and unknown/newer parts
        block_n, vmem_limit = 8192, 64 << 20
    try:
        cap = pltpu.get_tpu_info().vmem_capacity_bytes
        vmem_limit = min(vmem_limit, int(cap * 0.75))
    except Exception:
        pass
    return block_n, vmem_limit


_MIN_STEPS = 4          # target grid steps once N is large (pipelining, v7x dual-TC)
_SPLIT_THRESHOLD = 2048  # below this, splitting costs more step overhead than it hides


def _choose_row_tile(n, block_n):
    block_n = max(8, int(block_n))
    if n >= _SPLIT_THRESHOLD:
        tn = min(block_n, pl.cdiv(n, _MIN_STEPS))
    else:
        tn = min(block_n, n)
    tn = _round_up(tn, 8)
    if tn >= n:
        return n
    return tn


def _vmem_bytes(tn, d_in, h1d, h2d, d_out, x_isz, w_isz, out_isz, out_bufs):
    """Conservative VMEM estimate (lane padding to 128 included -- the (tn,16)
    x tile really occupies tn x 128 lanes, an 8x inflation over raw bytes)."""
    lane = lambda c: max(_round_up(c, 128), 128)
    rows = max(_round_up(tn, 8), 8)
    w_rows = lambda r: max(_round_up(r, 8), 8)
    x_bytes = 2 * rows * lane(d_in) * x_isz                      # double-buffered x
    out_bytes = out_bufs * rows * lane(d_out) * out_isz          # multi-buffered out
    w_bytes = 2 * w_isz * (w_rows(d_in) * lane(h1d)
                           + w_rows(h1d) * lane(h2d)
                           + w_rows(h2d) * lane(d_out))
    b_bytes = 2 * 4 * 8 * (lane(h1d) + lane(h2d) + lane(d_out))
    interm = rows * 4 * (lane(h1d) + lane(h2d) + lane(d_out))    # f32 h1/h2/h3
    return x_bytes + out_bytes + w_bytes + b_bytes + interm


@functools.partial(
    jax.jit,
    static_argnames=("block_n", "compute_dtype", "out_dtype", "precision"))
def mlp_forward(x, params, block_n=None, compute_dtype=jnp.bfloat16,
                out_dtype=None, precision=None):
    """Runs the fused MLP. Returns (x, features) like the PyTorch module.

    block_n:       rows per grid step (None -> generation-aware default).
    compute_dtype: matmul operand dtype (default bf16: MXU fast path + smaller
                   weight/activation streams; accumulation stays f32).
                   None -> f32 operands.
    out_dtype:     dtype of the written features (default f32; bf16 halves the
                   binding HBM writeback stream).
    precision:     jax.lax.Precision for the dots. None = TPU default lowering
                   (bf16 passes, declared intentionally). Use HIGHEST with
                   compute_dtype=None for bit-level f32 parity (~3x MXU cost).
    """
    w1, b1, w2, b2, w3, b3 = params
    n, d_in = x.shape
    h1d, h2d, d_out = w1.shape[1], w2.shape[1], w3.shape[1]

    # Weights are tiny and VMEM-resident: casting them on the XLA side is free.
    if compute_dtype is not None:
        cd = jnp.dtype(compute_dtype)
        w1 = w1.astype(cd)
        w2 = w2.astype(cd)
        w3 = w3.astype(cd)
        w_isz = cd.itemsize
    else:
        w_isz = 4
    od = jnp.dtype(out_dtype) if out_dtype is not None else jnp.dtype(jnp.float32)

    gen_block_n, vmem_limit = _tpu_generation_defaults()
    bn = block_n if block_n is not None else gen_block_n

    tn = _choose_row_tile(n, bn)
    # Belt-and-suspenders VMEM budget guard (matters when callers pass huge
    # block_n, especially on v7x's 64 MiB physical VMEM).
    while tn > 512:
        steps = pl.cdiv(n, tn)
        bufs = 3 if steps >= 3 else 2
        if _vmem_bytes(tn, d_in, h1d, h2d, d_out, x.dtype.itemsize, w_isz,
                       od.itemsize, bufs) <= int(0.75 * vmem_limit):
            break
        tn = _round_up(max(tn // 2, 512), 8)
    if tn >= n:
        tn = n

    num_steps = pl.cdiv(n, tn)
    out_bufs = 3 if num_steps >= 3 else 2

    if out_bufs == 3:
        # The output DMA is the binding stream: a third buffer hides writeback
        # bursts behind the next step's compute.
        out_spec = pl.BlockSpec((tn, d_out), lambda i: (i, 0),
                                pipeline_mode=pl.Buffered(3))
    else:
        out_spec = pl.BlockSpec((tn, d_out), lambda i: (i, 0))

    # TODO(synk): if an xprof on v7x shows one TensorCore idle, switch the row
    # axis to pltpu.CORE_PARALLEL (or add an explicit leading core axis).
    features = pl.pallas_call(
        functools.partial(_mlp_kernel, precision=precision),
        out_shape=jax.ShapeDtypeStruct((n, d_out), od),
        grid_spec=pltpu.PrefetchScalarGridSpec(
            num_scalar_prefetch=0,
            grid=(num_steps,),
            in_specs=[
                pl.BlockSpec((tn, d_in), lambda i: (i, 0)),    # x row tile
                pl.BlockSpec((d_in, h1d), lambda i: (0, 0)),   # W1 (resident)
                pl.BlockSpec((1, h1d), lambda i: (0, 0)),      # b1 (f32)
                pl.BlockSpec((h1d, h2d), lambda i: (0, 0)),    # W2 (resident)
                pl.BlockSpec((1, h2d), lambda i: (0, 0)),      # b2 (f32)
                pl.BlockSpec((h2d, d_out), lambda i: (0, 0)),  # W3 (resident)
                pl.BlockSpec((1, d_out), lambda i: (0, 0)),    # b3 (f32)
            ],
            out_specs=out_spec,
        ),
        compiler_params=pltpu.CompilerParams(
            dimension_semantics=("parallel",),   # shards row tiles across TCs
            vmem_limit_bytes=vmem_limit,         # generation-aware scoped limit
        ),
    )(x, w1, b1, w2, b2, w3, b3)

    return x, features


def init_params(key, input_feature_len, out_feature_len=128):
    """Deterministic PyTorch-style (Kaiming-uniform-ish) init, shapes as in __init__."""
    dims = [(input_feature_len, 64), (64, 128), (128, out_feature_len)]
    params = []
    for fan_in, fan_out in dims:
        key, kw, kb = jax.random.split(key, 3)
        bound = 1.0 / jnp.sqrt(jnp.float32(fan_in))
        # stored as (in, out) so the kernel computes x @ W + b
        w = jax.random.uniform(kw, (fan_in, fan_out), jnp.float32, -bound, bound)
        b = jax.random.uniform(kb, (1, fan_out), jnp.float32, -bound, bound)
        params += [w, b]
    return tuple(params)


if __name__ == "__main__":
    key = jax.random.PRNGKey(0)
    k_x, k_p, k_x2 = jax.random.split(key, 3)

    input_feature_len = 16
    out_feature_len = 128
    params = init_params(k_p, input_feature_len, out_feature_len)

    P_HI = jax.lax.Precision.HIGHEST

    def ref_mlp_hi(xx):
        w1, b1, w2, b2, w3, b3 = params
        r = jnp.maximum(jnp.dot(xx, w1, precision=P_HI) + b1, 0.0)
        r = jnp.maximum(jnp.dot(r, w2, precision=P_HI) + b2, 0.0)
        return jnp.dot(r, w3, precision=P_HI) + b3

    def ref_mlp_default(xx):
        w1, b1, w2, b2, w3, b3 = params
        r = jnp.maximum(xx @ w1 + b1, 0.0)
        r = jnp.maximum(r @ w2 + b2, 0.0)
        return r @ w3 + b3

    def rel_err(a, b):
        b32 = b.astype(jnp.float32)
        return jnp.max(jnp.abs(a.astype(jnp.float32) - b32)) / (
            jnp.max(jnp.abs(b32)) + 1e-6)

    # 1) Small batch, single tile, default performance path (bf16 operands,
    #    f32 output).  Error budget reflects the 3-layer bf16 activation chain.
    x_small = jax.random.normal(k_x, (8, input_feature_len), jnp.float32)
    x_out, feat = mlp_forward(x_small, params)
    jax.block_until_ready((x_out, feat))
    assert x_out.shape == (8, input_feature_len) and x_out.dtype == x_small.dtype
    assert feat.shape == (8, out_feature_len) and feat.dtype == jnp.float32
    assert rel_err(feat, ref_mlp_hi(x_small)) < 3e-2

    # 2) f32-operand path (declared default TPU matmul lowering) vs an
    #    identically-lowered XLA reference: tight tolerance.
    _, feat_f32 = mlp_forward(x_small, params, compute_dtype=None)
    jax.block_until_ready(feat_f32)
    assert jnp.allclose(feat_f32, ref_mlp_default(x_small), atol=1e-5, rtol=1e-5)

    # 3) Multi-tile path with a ragged last tile (grid=3) + triple-buffered out.
    x_med = jax.random.normal(k_x2, (300, input_feature_len), jnp.float32)
    _, feat_med = mlp_forward(x_med, params, block_n=128)
    jax.block_until_ready(feat_med)
    assert feat_med.shape == (300, out_feature_len)
    assert rel_err(feat_med, ref_mlp_hi(x_med)) < 3e-2

    # 4) Full bf16 streaming: bf16 output halves the binding HBM writeback.
    _, feat_bf = mlp_forward(x_med, params, block_n=128, out_dtype=jnp.bfloat16)
    jax.block_until_ready(feat_bf)
    assert feat_bf.dtype == jnp.bfloat16
    assert rel_err(feat_bf, ref_mlp_hi(x_med)) < 3e-2

    print("KERNEL_OK")
</pallas_src>

<mosaic_0001>
module attributes {stable_mosaic.version = 11 : i64} {
  func.func @_mlp_kernel(%arg0: i32, %arg1: memref<8x16xf32, #tpu.memory_space<vmem>>, %arg2: memref<16x64xbf16, #tpu.memory_space<vmem>>, %arg3: memref<1x64xf32, #tpu.memory_space<vmem>>, %arg4: memref<64x128xbf16, #tpu.memory_space<vmem>>, %arg5: memref<1x128xf32, #tpu.memory_space<vmem>>, %arg6: memref<128x128xbf16, #tpu.memory_space<vmem>>, %arg7: memref<1x128xf32, #tpu.memory_space<vmem>>, %arg8: memref<8x128xf32, #tpu.memory_space<vmem>>) attributes {dimension_semantics = [#tpu.dimension_semantics<parallel>], iteration_bounds = array<i64: 1>, scalar_prefetch = 0 : i64, scratch_operands = 0 : i64, tpu.core_type = #tpu.core_type<tc>, window_params = [{transform_indices = @transform_0, window_bounds = array<i64: 8, 16>}, {pipeline_mode = #tpu.pipeline_mode<synchronous>, transform_indices = @transform_1, window_bounds = array<i64: 16, 64>}, {pipeline_mode = #tpu.pipeline_mode<synchronous>, transform_indices = @transform_2, window_bounds = array<i64: 1, 64>}, {pipeline_mode = #tpu.pipeline_mode<synchronous>, transform_indices = @transform_3, window_bounds = array<i64: 64, 128>}, {pipeline_mode = #tpu.pipeline_mode<synchronous>, transform_indices = @transform_4, window_bounds = array<i64: 1, 128>}, {pipeline_mode = #tpu.pipeline_mode<synchronous>, transform_indices = @transform_5, window_bounds = array<i64: 128, 128>}, {pipeline_mode = #tpu.pipeline_mode<synchronous>, transform_indices = @transform_6, window_bounds = array<i64: 1, 128>}, {transform_indices = @transform_7, window_bounds = array<i64: 8, 128>}]} {
    %c0 = arith.constant 0 : index
    %c0_0 = arith.constant 0 : index
    %0 = vector.load %arg1[%c0, %c0_0] : memref<8x16xf32, #tpu.memory_space<vmem>>, vector<8x16xf32>
    %1 = arith.truncf %0 : vector<8x16xf32> to vector<8x16xbf16>
    %c0_1 = arith.constant 0 : index
    %c0_2 = arith.constant 0 : index
    %2 = vector.load %arg2[%c0_1, %c0_2] : memref<16x64xbf16, #tpu.memory_space<vmem>>, vector<16x64xbf16>
    %cst = arith.constant dense<0.000000e+00> : vector<8x64xf32>
    %3 = tpu.matmul %1, %2, %cst {dimension_numbers = #tpu.dot_dimension_numbers<[1], [0], [0], [1], [0, 0, 1, 1], [], []>} : vector<8x16xbf16>, vector<16x64xbf16>, vector<8x64xf32> -> vector<8x64xf32>
    %c0_3 = arith.constant 0 : index
    %c0_4 = arith.constant 0 : index
    %4 = vector.load %arg3[%c0_3, %c0_4] : memref<1x64xf32, #tpu.memory_space<vmem>>, vector<1x64xf32>
    %5 = vector.broadcast %4 : vector<1x64xf32> to vector<8x64xf32>
    %6 = arith.addf %3, %5 : vector<8x64xf32>
    %cst_5 = arith.constant 0.000000e+00 : f32
    %7 = vector.broadcast %cst_5 : f32 to vector<8x64xf32>
    %8 = arith.maximumf %6, %7 : vector<8x64xf32>
    %9 = arith.truncf %8 : vector<8x64xf32> to vector<8x64xbf16>
    %c0_6 = arith.constant 0 : index
    %c0_7 = arith.constant 0 : index
    %10 = vector.load %arg4[%c0_6, %c0_7] : memref<64x128xbf16, #tpu.memory_space<vmem>>, vector<64x128xbf16>
    %cst_8 = arith.constant dense<0.000000e+00> : vector<8x128xf32>
    %11 = tpu.matmul %9, %10, %cst_8 {dimension_numbers = #tpu.dot_dimension_numbers<[1], [0], [0], [1], [0, 0, 1, 1], [], []>} : vector<8x64xbf16>, vector<64x128xbf16>, vector<8x128xf32> -> vector<8x128xf32>
    %c0_9 = arith.constant 0 : index
    %c0_10 = arith.constant 0 : index
    %12 = vector.load %arg5[%c0_9, %c0_10] : memref<1x128xf32, #tpu.memory_space<vmem>>, vector<1x128xf32>
    %13 = vector.broadcast %12 : vector<1x128xf32> to vector<8x128xf32>
    %14 = arith.addf %11, %13 : vector<8x128xf32>
    %cst_11 = arith.constant 0.000000e+00 : f32
    %15 = vector.broadcast %cst_11 : f32 to vector<8x128xf32>
    %16 = arith.maximumf %14, %15 : vector<8x128xf32>
    %17 = arith.truncf %16 : vector<8x128xf32> to vector<8x128xbf16>
    %c0_12 = arith.constant 0 : index
    %c0_13 = arith.constant 0 : index
    %18 = vector.load %arg6[%c0_12, %c0_13] : memref<128x128xbf16, #tpu.memory_space<vmem>>, vector<128x128xbf16>
    %cst_14 = arith.constant dense<0.000000e+00> : vector<8x128xf32>
    %19 = tpu.matmul %17, %18, %cst_14 {dimension_numbers = #tpu.dot_dimension_numbers<[1], [0], [0], [1], [0, 0, 1, 1], [], []>} : vector<8x128xbf16>, vector<128x128xbf16>, vector<8x128xf32> -> vector<8x128xf32>
    %c0_15 = arith.constant 0 : index
    %c0_16 = arith.constant 0 : index
    %20 = vector.load %arg7[%c0_15, %c0_16] : memref<1x128xf32, #tpu.memory_space<vmem>>, vector<1x128xf32>
    %21 = vector.broadcast %20 : vector<1x128xf32> to vector<8x128xf32>
    %22 = arith.addf %19, %21 : vector<8x128xf32>
    %c0_17 = arith.constant 0 : index
    %c0_18 = arith.constant 0 : index
    %23 = vector.load %arg8[%c0_17, %c0_18] : memref<8x128xf32, #tpu.memory_space<vmem>>, vector<8x128xf32>
    tpu.vector_store %arg8[%c0_17, %c0_18], %22 {strides = array<i32>} : memref<8x128xf32, #tpu.memory_space<vmem>>, vector<8x128xf32>,
    return
  }
  func.func @transform_0(%arg0: i32) -> (i32, i32) {
    %c0_i32 = arith.constant 0 : i32
    %c0_i32_0 = arith.constant 0 : i32
    return %arg0, %c0_i32 : i32, i32
  }
  func.func @transform_1(%arg0: i32) -> (i32, i32) {
    %c0_i32 = arith.constant 0 : i32
    %c0_i32_0 = arith.constant 0 : i32
    %c0_i32_1 = arith.constant 0 : i32
    return %c0_i32, %c0_i32_0 : i32, i32
  }
  func.func @transform_2(%arg0: i32) -> (i32, i32) {
    %c0_i32 = arith.constant 0 : i32
    %c0_i32_0 = arith.constant 0 : i32
    %c0_i32_1 = arith.constant 0 : i32
    return %c0_i32, %c0_i32_0 : i32, i32
  }
  func.func @transform_3(%arg0: i32) -> (i32, i32) {
    %c0_i32 = arith.constant 0 : i32
    %c0_i32_0 = arith.constant 0 : i32
    %c0_i32_1 = arith.constant 0 : i32
    return %c0_i32, %c0_i32_0 : i32, i32
  }
  func.func @transform_4(%arg0: i32) -> (i32, i32) {
    %c0_i32 = arith.constant 0 : i32
    %c0_i32_0 = arith.constant 0 : i32
    %c0_i32_1 = arith.constant 0 : i32
    return %c0_i32, %c0_i32_0 : i32, i32
  }
  func.func @transform_5(%arg0: i32) -> (i32, i32) {
    %c0_i32 = arith.constant 0 : i32
    %c0_i32_0 = arith.constant 0 : i32
    %c0_i32_1 = arith.constant 0 : i32
    return %c0_i32, %c0_i32_0 : i32, i32
  }
  func.func @transform_6(%arg0: i32) -> (i32, i32) {
    %c0_i32 = arith.constant 0 : i32
    %c0_i32_0 = arith.constant 0 : i32
    %c0_i32_1 = arith.constant 0 : i32
    return %c0_i32, %c0_i32_0 : i32, i32
  }
  func.func @transform_7(%arg0: i32) -> (i32, i32) {
    %c0_i32 = arith.constant 0 : i32
    %c0_i32_0 = arith.constant 0 : i32
    return %arg0, %c0_i32 : i32, i32
  }
}

</mosaic_0001>

<llo_original>
// kernel: mlp_forward.1
$region0: #{mlp_forward.1}
  #allocation0 [shape = 'u32[]', space=smem, size = 0x4, offset = 0x4, fixed_abs, tag = 'smem constant byte address 0x4 - core index']
  #allocation1 [shape = 'u32[144,128]{1,0:T(1,128)}', space=vmem, size = 0x12000, scoped, tag = 'internal scratch']
  %s0 = inlined_call_operand.vmem [shape: f32[8,16], index: 0, kind: input, shape index: {}]
  %s1 = inlined_call_operand.vmem [shape: bf16[16,64], index: 1, kind: input, shape index: {}]
  %s2 = inlined_call_operand.vmem [shape: f32[1,64], index: 2, kind: input, shape index: {}]
  %s3 = inlined_call_operand.vmem [shape: bf16[64,128], index: 3, kind: input, shape index: {}]
  %s4 = inlined_call_operand.vmem [shape: f32[1,128], index: 4, kind: input, shape index: {}]
  %s5 = inlined_call_operand.vmem [shape: bf16[128,128], index: 5, kind: input, shape index: {}]
  %s6 = inlined_call_operand.vmem [shape: f32[1,128], index: 6, kind: input, shape index: {}]
  %s7 = inlined_call_operand.hbm [shape: f32[8,128], index: 7, kind: output, shape index: {}]
  %s8 = sld [smem:[#allocation0]]
  $region38: #{mlp_forward.1} parent=0
    _
  %s10 = ssub.s32 1, %s8
  %s11 = scalar_select 0, %s10, %s8
  $region1: #{mlp_forward.1} parent=0
    #allocation2 [shape = 'u8[4096]{0}', space=vmem, size = 0x1000, scoped, tag = 'output window, operand 0, single buffered']
    #allocation3 [shape = 's32[1]{0}', space=sflag, size = 0x4, scoped, tag = 'scoped memory for mlp_forward.1']
    %12 = vsyncpa [#allocation3], 0
    // Predicated region
    $region2: #{mlp_forward.1} parent=1 // pred_check
      _
    $region3: #{mlp_forward.1} parent=1 // pred_check_branch
      %14 = sbr.rel (0) target = $region5
    $region4: #{mlp_forward.1} parent=1 // pred_region
      _
    $region5: #{mlp_forward.1} parent=1 // pred_fallthru
      _
    // Predicated region
    $region6: #{mlp_forward.1} parent=1 // pred_check
      _
    $region7: #{mlp_forward.1} parent=1 // pred_check_branch
      %16 = sbr.rel (0) target = $region9
    $region8: #{mlp_forward.1} parent=1 // pred_region
      _
    $region9: #{mlp_forward.1} parent=1 // pred_fallthru
      _
    // Predicated region
    $region10: #{mlp_forward.1} parent=1 // pred_check
      _
    $region11: #{mlp_forward.1} parent=1 // pred_check_branch
      %18 = sbr.rel (0) target = $region13
    $region12: #{mlp_forward.1} parent=1 // pred_region
      _
    $region13: #{mlp_forward.1} parent=1 // pred_fallthru
      _
    // Predicated region
    $region14: #{mlp_forward.1} parent=1 // pred_check
      _
    $region15: #{mlp_forward.1} parent=1 // pred_check_branch
      %20 = sbr.rel (0) target = $region17
    $region16: #{mlp_forward.1} parent=1 // pred_region
      _
    $region17: #{mlp_forward.1} parent=1 // pred_fallthru
      _
    // Predicated region
    $region18: #{mlp_forward.1} parent=1 // pred_check
      _
    $region19: #{mlp_forward.1} parent=1 // pred_check_branch
      %22 = sbr.rel (0) target = $region21
    $region20: #{mlp_forward.1} parent=1 // pred_region
      _
    $region21: #{mlp_forward.1} parent=1 // pred_fallthru
      _
    // Predicated region
    $region22: #{mlp_forward.1} parent=1 // pred_check
      _
    $region23: #{mlp_forward.1} parent=1 // pred_check_branch
      %24 = sbr.rel (0) target = $region25
    $region24: #{mlp_forward.1} parent=1 // pred_region
      _
    $region25: #{mlp_forward.1} parent=1 // pred_fallthru
      _
    // Predicated region
    $region26: #{mlp_forward.1} parent=1 // pred_check
      _
    $region27: #{mlp_forward.1} parent=1 // pred_check_branch
      %26 = sbr.rel (0) target = $region29
    $region28: #{mlp_forward.1} parent=1 // pred_region
      _
    $region29: #{mlp_forward.1} parent=1 // pred_fallthru
      _
    %v28 = vld [vmem:[%s0] sm:$0xff]
    %v29 = vpack.c.bf16 %v28, %v28
    %v30 = vld [vmem:[%s1] sm:$0xf]
    %v31 = vld [vmem:[%s1 + $0x4] sm:$0xf]
    %v32 = vld [vmem:[%s2] sm:$0x1]
    %v34 = vlaneseq
    %v35 = vshrl.u32 %v34, 7
    %v36 = vsub.s32 0, %v35
    %v37 = vrot.slane %v32, %v36
    %v41 = vunpack.c.l.b16 %v30
    %v42 = vunpack.c.l.b16 %v31
    %v43 = vpack.c.b16 %v42, %v41
    %vm45 = vcmask 130048
    %v47 = vsel %vm45, %v29, 0
    %49 = vmatprep.subr.bf16.mxu0 0
    %50 = vmatpush1.bf16.msra.mxu0 0
    %51 = vmatprep.subr.bf16.mxu0 0
    %52 = vmatpush1.bf16.msra.mxu0 0
    %53 = vmatprep.subr.bf16.mxu0 0
    %54 = vmatpush1.bf16.msra.mxu0 0
    %55 = vmatprep.subr.bf16.mxu0 0
    %56 = vmatpush1.bf16.msra.mxu0 0
    %57 = vmatprep.subr.bf16.mxu0 0
    %58 = vmatpush1.bf16.msra.mxu0 0
    %59 = vmatprep.subr.bf16.mxu0 0
    %60 = vmatpush1.bf16.msra.mxu0 0
    %61 = vmatprep.subr.bf16.mxu0 0
    %62 = vmatpush1.bf16.msra.mxu0 0
    %63 = vmatprep.subr.bf16.mxu0 0
    %64 = vmatpush1.bf16.msra.mxu0 %v43
    %65 = vmatprep.subr.bf16.mxu0 0
    %66 = vmatpush2.bf16.msra.mxu0 0
    %67 = vmatprep.subr.bf16.mxu0 0
    %68 = vmatpush2.bf16.msra.mxu0 0
    %69 = vmatprep.subr.bf16.mxu0 0
    %70 = vmatpush2.bf16.msra.mxu0 0
    %71 = vmatprep.subr.bf16.mxu0 0
    %72 = vmatpush2.bf16.msra.mxu0 0
    %73 = vmatprep.subr.bf16.mxu0 0
    %74 = vmatpush2.bf16.msra.mxu0 0
    %75 = vmatprep.subr.bf16.mxu0 0
    %76 = vmatpush2.bf16.msra.mxu0 0
    %77 = vmatprep.subr.bf16.mxu0 0
    %78 = vmatpush2.bf16.msra.mxu0 0
    %79 = vmatprep.subr.bf16.mxu0 0
    %80 = vmatpush2.bf16.msra.mxu0 0
    %81 = vmatprep.mubr.bf16.mxu0 0
    %82 = vmatmul.mubr.bf16.gmra.mxu0 %v47
    %v83 = vpop.f32.mrf.mxu0
    %v84 = vadd.f32 %v37, %v83
    %v85 = vpop.f32.mrf.mxu0
    %v86 = vpop.f32.mrf.mxu0
    %v87 = vpop.f32.mrf.mxu0
    %88 = vdwg.mxu0
    %v89 = vmax.f32 %v84, 0.0
    %v90 = vpack.c.bf16 %v89, %v89
    %v91 = vld [vmem:[%s3] sm:$0xf]
    %v92 = vld [vmem:[%s3 + $0x4] sm:$0xf]
    %v93 = vld [vmem:[%s3 + $0x8] sm:$0xf]
    %v94 = vld [vmem:[%s3 + $0xc] sm:$0xf]
    %v95 = vld [vmem:[%s3 + $0x10] sm:$0xf]
    %v96 = vld [vmem:[%s3 + $0x14] sm:$0xf]
    %v97 = vld [vmem:[%s3 + $0x18] sm:$0xf]
    %v98 = vld [vmem:[%s3 + $0x1c] sm:$0xf]
    %v99 = vld [vmem:[%s4] sm:$0x1]
    %v101 = vlaneseq
    %v102 = vshrl.u32 %v101, 7
    %v103 = vsub.s32 0, %v102
    %v104 = vrot.slane %v99, %v103
    %v114 = vunpack.c.l.b16 %v91
    %v115 = vunpack.c.l.b16 %v92
    %v116 = vunpack.c.l.b16 %v93
    %v117 = vunpack.c.l.b16 %v94
    %v118 = vunpack.c.l.b16 %v95
    %v119 = vunpack.c.l.b16 %v96
    %v120 = vunpack.c.l.b16 %v97
    %v121 = vunpack.c.l.b16 %v98
    %v122 = vpack.c.b16 %v115, %v114
    %v123 = vpack.c.b16 %v117, %v116
    %v124 = vpack.c.b16 %v119, %v118
    %v125 = vpack.c.b16 %v121, %v120
    %vm130 = vcmask 523264
    %v132 = vsel %vm130, %v90, 0
    %134 = vmatprep.subr.bf16.mxu0 0
    %135 = vmatpush1.bf16.msra.mxu0 0
    %136 = vmatprep.subr.bf16.mxu0 0
    %137 = vmatpush1.bf16.msra.mxu0 0
    %138 = vmatprep.subr.bf16.mxu0 0
    %139 = vmatpush1.bf16.msra.mxu0 0
    %140 = vmatprep.subr.bf16.mxu0 0
    %141 = vmatpush1.bf16.msra.mxu0 0
    %142 = vmatprep.subr.bf16.mxu0 0
    %143 = vmatpush1.bf16.msra.mxu0 %v125
    %144 = vmatprep.subr.bf16.mxu0 0
    %145 = vmatpush1.bf16.msra.mxu0 %v124
    %146 = vmatprep.subr.bf16.mxu0 0
    %147 = vmatpush1.bf16.msra.mxu0 %v123
    %148 = vmatprep.subr.bf16.mxu0 0
    %149 = vmatpush1.bf16.msra.mxu0 %v122
    %150 = vmatprep.subr.bf16.mxu0 0
    %151 = vmatpush2.bf16.msra.mxu0 0
    %152 = vmatprep.subr.bf16.mxu0 0
    %153 = vmatpush2.bf16.msra.mxu0 0
    %154 = vmatprep.subr.bf16.mxu0 0
    %155 = vmatpush2.bf16.msra.mxu0 0
    %156 = vmatprep.subr.bf16.mxu0 0
    %157 = vmatpush2.bf16.msra.mxu0 0
    %158 = vmatprep.subr.bf16.mxu0 0
    %159 = vmatpush2.bf16.msra.mxu0 0
    %160 = vmatprep.subr.bf16.mxu0 0
    %161 = vmatpush2.bf16.msra.mxu0 0
    %162 = vmatprep.subr.bf16.mxu0 0
    %163 = vmatpush2.bf16.msra.mxu0 0
    %164 = vmatprep.subr.bf16.mxu0 0
    %165 = vmatpush2.bf16.msra.mxu0 0
    %166 = vmatprep.mubr.bf16.mxu0 0
    %167 = vmatmul.mubr.bf16.gmra.mxu0 %v132
    %v168 = vpop.f32.mrf.mxu0
    %v169 = vadd.f32 %v104, %v168
    %v170 = vpop.f32.mrf.mxu0
    %v171 = vpop.f32.mrf.mxu0
    %v172 = vpop.f32.mrf.mxu0
    %173 = vdwg.mxu0
    %v174 = vmax.f32 %v169, 0.0
    %v175 = vpack.c.bf16 %v174, %v174
    %v176 = vld [vmem:[%s5] sm:$0xf]
    %v177 = vld [vmem:[%s5 + $0x4] sm:$0xf]
    %v178 = vld [vmem:[%s5 + $0x8] sm:$0xf]
    %v179 = vld [vmem:[%s5 + $0xc] sm:$0xf]
    %v180 = vld [vmem:[%s5 + $0x10] sm:$0xf]
    %v181 = vld [vmem:[%s5 + $0x14] sm:$0xf]
    %v182 = vld [vmem:[%s5 + $0x18] sm:$0xf]
    %v183 = vld [vmem:[%s5 + $0x1c] sm:$0xf]
    %v184 = vld [vmem:[%s5 + $0x20] sm:$0xf]
    %v185 = vld [vmem:[%s5 + $0x24] sm:$0xf]
    %v186 = vld [vmem:[%s5 + $0x28] sm:$0xf]
    %v187 = vld [vmem:[%s5 + $0x2c] sm:$0xf]
    %v188 = vld [vmem:[%s5 + $0x30] sm:$0xf]
    %v189 = vld [vmem:[%s5 + $0x34] sm:$0xf]
    %v190 = vld [vmem:[%s5 + $0x38] sm:$0xf]
    %v191 = vld [vmem:[%s5 + $0x3c] sm:$0xf]
    %v192 = vld [vmem:[%s6] sm:$0x1]
    %v194 = vlaneseq
    %v195 = vshrl.u32 %v194, 7
    %v196 = vsub.s32 0, %v195
    %v197 = vrot.slane %v192, %v196
    %v215 = vunpack.c.l.b16 %v176
    %v216 = vunpack.c.l.b16 %v177
    %v217 = vunpack.c.l.b16 %v178
    %v218 = vunpack.c.l.b16 %v179
    %v219 = vunpack.c.l.b16 %v180
    %v220 = vunpack.c.l.b16 %v181
    %v221 = vunpack.c.l.b16 %v182
    %v222 = vunpack.c.l.b16 %v183
    %v223 = vunpack.c.l.b16 %v184
    %v224 = vunpack.c.l.b16 %v185
    %v225 = vunpack.c.l.b16 %v186
    %v226 = vunpack.c.l.b16 %v187
    %v227 = vunpack.c.l.b16 %v188
    %v228 = vunpack.c.l.b16 %v189
    %v229 = vunpack.c.l.b16 %v190
    %v230 = vunpack.c.l.b16 %v191
    %v231 = vpack.c.b16 %v216, %v215
    %v232 = vpack.c.b16 %v218, %v217
    %v233 = vpack.c.b16 %v220, %v219
    %v234 = vpack.c.b16 %v222, %v221
    %v235 = vpack.c.b16 %v224, %v223
    %v236 = vpack.c.b16 %v226, %v225
    %v237 = vpack.c.b16 %v228, %v227
    %v238 = vpack.c.b16 %v230, %v229
    %247 = vmatprep.subr.bf16.mxu0 0
    %248 = vmatpush1.bf16.msra.mxu0 %v238
    %249 = vmatprep.subr.bf16.mxu0 0
    %250 = vmatpush1.bf16.msra.mxu0 %v237
    %251 = vmatprep.subr.bf16.mxu0 0
    %252 = vmatpush1.bf16.msra.mxu0 %v236
    %253 = vmatprep.subr.bf16.mxu0 0
    %254 = vmatpush1.bf16.msra.mxu0 %v235
    %255 = vmatprep.subr.bf16.mxu0 0
    %256 = vmatpush1.bf16.msra.mxu0 %v234
    %257 = vmatprep.subr.bf16.mxu0 0
    %258 = vmatpush1.bf16.msra.mxu0 %v233
    %259 = vmatprep.subr.bf16.mxu0 0
    %260 = vmatpush1.bf16.msra.mxu0 %v232
    %261 = vmatprep.subr.bf16.mxu0 0
    %262 = vmatpush1.bf16.msra.mxu0 %v231
    %263 = vmatprep.subr.bf16.mxu0 0
    %264 = vmatpush2.bf16.msra.mxu0 0
    %265 = vmatprep.subr.bf16.mxu0 0
    %266 = vmatpush2.bf16.msra.mxu0 0
    %267 = vmatprep.subr.bf16.mxu0 0
    %268 = vmatpush2.bf16.msra.mxu0 0
    %269 = vmatprep.subr.bf16.mxu0 0
    %270 = vmatpush2.bf16.msra.mxu0 0
    %271 = vmatprep.subr.bf16.mxu0 0
    %272 = vmatpush2.bf16.msra.mxu0 0
    %273 = vmatprep.subr.bf16.mxu0 0
    %274 = vmatpush2.bf16.msra.mxu0 0
    %275 = vmatprep.subr.bf16.mxu0 0
    %276 = vmatpush2.bf16.msra.mxu0 0
    %277 = vmatprep.subr.bf16.mxu0 0
    %278 = vmatpush2.bf16.msra.mxu0 0
    %279 = vmatprep.mubr.bf16.mxu0 0
    %280 = vmatmul.mubr.bf16.gmra.mxu0 %v175
    %v281 = vpop.f32.mrf.mxu0
    %v282 = vadd.f32 %v197, %v281
    %v283 = vpop.f32.mrf.mxu0
    %v284 = vpop.f32.mrf.mxu0
    %v285 = vpop.f32.mrf.mxu0
    %286 = vdwg.mxu0
    %287 = vst [vmem:[#allocation2] sm:$0xff] %v282
    // Predicated region
    $region30: #{mlp_forward.1} parent=1 // pred_check
      _
    $region31: #{mlp_forward.1} parent=1 // pred_check_branch
      %289 = sbr.rel (0) target = $region33
    $region32: #{mlp_forward.1} parent=1 // pred_region
      %s291 = ssub.s32 128, 128
      %292 = vsyncadd [#allocation3], %s291
      %s294 = sshll.u32 [#allocation2], 4
      %s295 = int_to_ptr.vmem [resolvable:$true] %s294
      %297 = dma.vmem_to_hbm [thread:$0]  %s295, 128, %s7, [#allocation3]
    $region33: #{mlp_forward.1} parent=1 // pred_fallthru
      _
    // Predicated region
    $region34: #{mlp_forward.1} parent=1 // pred_check
      _
    $region35: #{mlp_forward.1} parent=1 // pred_check_branch
      %299 = sbr.rel (0) target = $region37
    $region36: #{mlp_forward.1} parent=1 // pred_region
      %300 = dma.done [#allocation3], 128
    $region37: #{mlp_forward.1} parent=1 // pred_fallthru
      _
    %301 = vsyncpa [#allocation3], 1

</llo_original>
